<compile_context>
chip_gen: v5e
topology: v5e:2x2
jax: 0.10.0
libtpu: 0.0.40
codegen_flags: <defaults>
</compile_context>

<pallas_src>
import functools

import jax
import jax.numpy as jnp
from jax.experimental import pallas as pl
from jax.experimental.pallas import tpu as pltpu

LANE = 128
SUBLANE = 8


def _focal_kernel(pred_ref, true_ref, out_ref, *, gamma, alpha, tile_rows,
                  n_real, needs_mask):
    x = pred_ref[...].astype(jnp.float32)
    y = true_ref[...].astype(jnp.float32)

    # Shared transcendental: e = exp(-|x|)
    e = jnp.exp(-jnp.abs(x))

    # BCEWithLogitsLoss (reduction='none'), numerically stable:
    #   max(x, 0) - x*y + log(1 + exp(-|x|))
    bce = jnp.maximum(x, 0.0) - x * y + jnp.log1p(e)

    # sigmoid(x) = where(x>=0, 1, e) / (1 + e)   (reuses e, exact reciprocal to
    # keep the rtol=1e-5 check comfortable)
    inv = 1.0 / (1.0 + e)
    pred_prob = jnp.where(x >= 0.0, 1.0, e) * inv

    p_t = y * pred_prob + (1.0 - y) * (1.0 - pred_prob)
    alpha_factor = y * alpha + (1.0 - y) * (1.0 - alpha)
    t = 1.0 - p_t
    if gamma == 1.5:
        modulating_factor = t * jnp.sqrt(t)
    elif gamma == 2.0:
        modulating_factor = t * t
    elif gamma == 1.0:
        modulating_factor = t
    elif gamma == 0.0:
        modulating_factor = jnp.ones_like(t)
    else:
        modulating_factor = jnp.power(t, gamma)

    loss = bce * alpha_factor * modulating_factor

    if needs_mask:
        # Only the tail region (wrapper zero-pad and/or out-of-bounds rows of the
        # ragged last block) is invalid; select (not multiply) so garbage/NaN in
        # the OOB part of the VMEM buffer cannot leak through.
        i = pl.program_id(0)
        row = jax.lax.broadcasted_iota(jnp.int32, loss.shape, 0)
        lane = jax.lax.broadcasted_iota(jnp.int32, loss.shape, 1)
        flat_idx = (i * tile_rows + row) * LANE + lane
        loss = jnp.where(flat_idx < n_real, loss, 0.0)

    # Fold (tile_rows, 128) -> (8, 128) with pure VPU vreg adds; the single
    # expensive full reduction happens once in the wrapper on a tiny array.
    partial = loss.reshape(tile_rows // SUBLANE, SUBLANE, LANE).sum(axis=0)
    out_ref[0] = partial


def focal_loss(pred, true, *, gamma=1.5, alpha=0.25, tile_rows=1024):
    """Focal loss (BCE-with-logits base, mean reduction) over all elements."""
    assert pred.shape == true.shape
    n_real = int(pred.size)

    # Keep native dtype; reshape is free for contiguous arrays.
    flat_p = pred.reshape(-1)
    flat_t = true.reshape(-1)

    # Minimal alignment so every block folds cleanly to (8, 128). This pad (and
    # its HBM copy) is only paid when the element count isn't 1024-aligned.
    chunk = SUBLANE * LANE
    pad = (-n_real) % chunk
    if pad:
        flat_p = jnp.pad(flat_p, (0, pad))
        flat_t = jnp.pad(flat_t, (0, pad))

    rows = flat_p.size // LANE            # multiple of SUBLANE
    p2 = flat_p.reshape(rows, LANE)
    t2 = flat_t.reshape(rows, LANE)

    tr = min(tile_rows, rows)             # both multiples of 8 -> tr is too
    num_blocks = (rows + tr - 1) // tr
    needs_mask = (num_blocks * tr * LANE) != n_real

    kernel = functools.partial(_focal_kernel, gamma=gamma, alpha=alpha,
                               tile_rows=tr, n_real=n_real,
                               needs_mask=needs_mask)

    partials = pl.pallas_call(
        kernel,
        out_shape=jax.ShapeDtypeStruct((num_blocks, SUBLANE, LANE), jnp.float32),
        grid_spec=pltpu.PrefetchScalarGridSpec(
            num_scalar_prefetch=0,
            grid=(num_blocks,),
            in_specs=[
                pl.BlockSpec((tr, LANE), lambda i: (i, 0)),
                pl.BlockSpec((tr, LANE), lambda i: (i, 0)),
            ],
            out_specs=pl.BlockSpec((1, SUBLANE, LANE), lambda i: (i, 0, 0)),
        ),
        compiler_params=pltpu.CompilerParams(
            dimension_semantics=("parallel",)),
    )(p2, t2)

    # reduction == 'mean' (inherited from BCEWithLogitsLoss default).
    return jnp.sum(partials) / jnp.float32(n_real)


def focal_loss_ref(pred, true, gamma=1.5, alpha=0.25):
    x = pred.astype(jnp.float32)
    y = true.astype(jnp.float32)
    bce = jnp.maximum(x, 0.0) - x * y + jnp.log1p(jnp.exp(-jnp.abs(x)))
    p = jax.nn.sigmoid(x)
    p_t = y * p + (1 - y) * (1 - p)
    af = y * alpha + (1 - y) * (1 - alpha)
    mf = (1.0 - p_t) ** gamma
    return jnp.mean(bce * af * mf)


if __name__ == "__main__":
    key = jax.random.PRNGKey(0)
    k1, k2 = jax.random.split(key)
    # NCHW like a detection head output: batch=2, channels=4, spatial=16
    pred = jax.random.normal(k1, (2, 4, 16, 16), dtype=jnp.float32)
    true = (jax.random.uniform(k2, (2, 4, 16, 16)) > 0.7).astype(jnp.float32)

    out = focal_loss(pred, true)
    out = jax.block_until_ready(out)

    ref = focal_loss_ref(pred, true)
    assert jnp.allclose(out, ref, rtol=1e-5, atol=1e-6), (out, ref)
    print("KERNEL_OK")
</pallas_src>

<mosaic_0001>
module attributes {stable_mosaic.version = 11 : i64} {
  func.func @_focal_kernel(%arg0: i32, %arg1: memref<16x128xf32, #tpu.memory_space<vmem>>, %arg2: memref<16x128xf32, #tpu.memory_space<vmem>>, %arg3: memref<1x8x128xf32, #tpu.memory_space<vmem>>) attributes {dimension_semantics = [#tpu.dimension_semantics<parallel>], iteration_bounds = array<i64: 1>, scalar_prefetch = 0 : i64, scratch_operands = 0 : i64, tpu.core_type = #tpu.core_type<tc>, window_params = [{transform_indices = @transform_0, window_bounds = array<i64: 16, 128>}, {transform_indices = @transform_1, window_bounds = array<i64: 16, 128>}, {transform_indices = @transform_2, window_bounds = array<i64: 1, 8, 128>}]} {
    %c0 = arith.constant 0 : index
    %c0_0 = arith.constant 0 : index
    %0 = vector.load %arg1[%c0, %c0_0] : memref<16x128xf32, #tpu.memory_space<vmem>>, vector<16x128xf32>
    %c0_1 = arith.constant 0 : index
    %c0_2 = arith.constant 0 : index
    %1 = vector.load %arg2[%c0_1, %c0_2] : memref<16x128xf32, #tpu.memory_space<vmem>>, vector<16x128xf32>
    %2 = math.absf %0 : vector<16x128xf32>
    %cst = arith.constant 0.000000e+00 : f32
    %3 = vector.broadcast %cst : f32 to vector<16x128xf32>
    %4 = arith.subf %3, %2 : vector<16x128xf32>
    %5 = math.exp %4 : vector<16x128xf32>
    %cst_3 = arith.constant 0.000000e+00 : f32
    %6 = vector.broadcast %cst_3 : f32 to vector<16x128xf32>
    %7 = arith.maximumf %0, %6 : vector<16x128xf32>
    %8 = arith.mulf %0, %1 : vector<16x128xf32>
    %9 = arith.subf %7, %8 : vector<16x128xf32>
    %10 = math.log1p %5 : vector<16x128xf32>
    %11 = arith.addf %9, %10 : vector<16x128xf32>
    %cst_4 = arith.constant 1.000000e+00 : f32
    %12 = vector.broadcast %cst_4 : f32 to vector<16x128xf32>
    %13 = arith.addf %12, %5 : vector<16x128xf32>
    %cst_5 = arith.constant 1.000000e+00 : f32
    %14 = vector.broadcast %cst_5 : f32 to vector<16x128xf32>
    %15 = arith.divf %14, %13 : vector<16x128xf32>
    %cst_6 = arith.constant 0.000000e+00 : f32
    %16 = vector.broadcast %cst_6 : f32 to vector<16x128xf32>
    %17 = arith.cmpf oge, %0, %16 : vector<16x128xf32>
    %cst_7 = arith.constant 1.000000e+00 : f32
    %18 = vector.broadcast %cst_7 : f32 to vector<16x128xf32>
    %19 = arith.select %17, %18, %5 : vector<16x128xi1>, vector<16x128xf32>
    %20 = arith.mulf %19, %15 : vector<16x128xf32>
    %21 = arith.mulf %1, %20 : vector<16x128xf32>
    %cst_8 = arith.constant 1.000000e+00 : f32
    %22 = vector.broadcast %cst_8 : f32 to vector<16x128xf32>
    %23 = arith.subf %22, %1 : vector<16x128xf32>
    %cst_9 = arith.constant 1.000000e+00 : f32
    %24 = vector.broadcast %cst_9 : f32 to vector<16x128xf32>
    %25 = arith.subf %24, %20 : vector<16x128xf32>
    %26 = arith.mulf %23, %25 : vector<16x128xf32>
    %27 = arith.addf %21, %26 : vector<16x128xf32>
    %cst_10 = arith.constant 2.500000e-01 : f32
    %28 = vector.broadcast %cst_10 : f32 to vector<16x128xf32>
    %29 = arith.mulf %1, %28 : vector<16x128xf32>
    %cst_11 = arith.constant 1.000000e+00 : f32
    %30 = vector.broadcast %cst_11 : f32 to vector<16x128xf32>
    %31 = arith.subf %30, %1 : vector<16x128xf32>
    %cst_12 = arith.constant 7.500000e-01 : f32
    %32 = vector.broadcast %cst_12 : f32 to vector<16x128xf32>
    %33 = arith.mulf %31, %32 : vector<16x128xf32>
    %34 = arith.addf %29, %33 : vector<16x128xf32>
    %cst_13 = arith.constant 1.000000e+00 : f32
    %35 = vector.broadcast %cst_13 : f32 to vector<16x128xf32>
    %36 = arith.subf %35, %27 : vector<16x128xf32>
    %37 = math.sqrt %36 : vector<16x128xf32>
    %38 = arith.mulf %36, %37 : vector<16x128xf32>
    %39 = arith.mulf %11, %34 : vector<16x128xf32>
    %40 = arith.mulf %39, %38 : vector<16x128xf32>
    %41 = vector.shape_cast %40 : vector<16x128xf32> to vector<2x8x128xf32>
    %cst_14 = arith.constant dense<0.000000e+00> : vector<8x128xf32>
    %42 = vector.multi_reduction <add>, %41, %cst_14 [0] : vector<2x8x128xf32> to vector<8x128xf32>
    %c0_15 = arith.constant 0 : index
    %c0_16 = arith.constant 0 : index
    %c0_17 = arith.constant 0 : index
    %43 = vector.load %arg3[%c0_15, %c0_16, %c0_17] : memref<1x8x128xf32, #tpu.memory_space<vmem>>, vector<1x8x128xf32>
    %44 = vector.shape_cast %43 : vector<1x8x128xf32> to vector<8x128xf32>
    %45 = vector.shape_cast %42 : vector<8x128xf32> to vector<1x8x128xf32>
    tpu.vector_store %arg3[%c0_15, %c0_16, %c0_17], %45 {strides = array<i32>} : memref<1x8x128xf32, #tpu.memory_space<vmem>>, vector<1x8x128xf32>,
    return
  }
  func.func @transform_0(%arg0: i32) -> (i32, i32) {
    %c0_i32 = arith.constant 0 : i32
    %c0_i32_0 = arith.constant 0 : i32
    return %arg0, %c0_i32 : i32, i32
  }
  func.func @transform_1(%arg0: i32) -> (i32, i32) {
    %c0_i32 = arith.constant 0 : i32
    %c0_i32_0 = arith.constant 0 : i32
    return %arg0, %c0_i32 : i32, i32
  }
  func.func @transform_2(%arg0: i32) -> (i32, i32, i32) {
    %c0_i32 = arith.constant 0 : i32
    %c0_i32_0 = arith.constant 0 : i32
    %c0_i32_1 = arith.constant 0 : i32
    return %arg0, %c0_i32, %c0_i32_0 : i32, i32, i32
  }
}

</mosaic_0001>

<llo_original>
// kernel: tpu_custom_call.1
$region0: #{tpu_custom_call.1}
  #allocation0 [shape = 'u32[]', space=smem, size = 0x4, offset = 0x4, fixed_abs, tag = 'smem constant byte address 0x4 - core index']
  #allocation1 [shape = 'u32[72,128]{1,0:T(1,128)}', space=vmem, size = 0x9000, scoped, tag = 'internal scratch']
  %s0 = inlined_call_operand.hbm [shape: f32[16,128], index: 0, kind: input, shape index: {}]
  %s1 = inlined_call_operand.hbm [shape: f32[16,128], index: 1, kind: input, shape index: {}]
  %s2 = inlined_call_operand.hbm [shape: f32[1,8,128], index: 2, kind: output, shape index: {}]
  %s3 = sld [smem:[#allocation0]]
  $region26: #{tpu_custom_call.1} parent=0
    _
  %s5 = ssub.s32 1, %s3
  %s6 = scalar_select 0, %s5, %s3
  $region1: #{tpu_custom_call.1} parent=0
    #allocation2 [shape = 'u8[8192]{0}', space=vmem, size = 0x2000, scoped, tag = 'input window, operand 0, single buffered']
    #allocation3 [shape = 's32[1]{0}', space=sflag, size = 0x4, scoped, tag = 'scoped memory for tpu_custom_call.1']
    #allocation4 [shape = 's32[1]{0}', space=sflag, size = 0x4, scoped, tag = 'scoped memory for tpu_custom_call.1']
    #allocation5 [shape = 'u8[8192]{0}', space=vmem, size = 0x2000, scoped, tag = 'input window, operand 1, single buffered']
    #allocation6 [shape = 's32[1]{0}', space=sflag, size = 0x4, scoped, tag = 'scoped memory for tpu_custom_call.1']
    #allocation7 [shape = 'u8[4096]{0}', space=vmem, size = 0x1000, scoped, tag = 'output window, operand 0, single buffered']
    %7 = vsyncpa [#allocation3], 0
    %8 = vsyncpa [#allocation6], 0
    %9 = vsyncpa [#allocation4], 0
    // Predicated region
    $region2: #{tpu_custom_call.1} parent=1 // pred_check
      _
    $region3: #{tpu_custom_call.1} parent=1 // pred_check_branch
      %11 = sbr.rel (0) target = $region5
    $region4: #{tpu_custom_call.1} parent=1 // pred_region
      %13 = vsyncadd [#allocation3], 0
      %s14 = sshll.u32 %s0, 4
      %s15 = int_to_ptr.hbm [resolvable:$true] %s14
      %s16 = sshll.u32 [#allocation2], 4
      %s17 = int_to_ptr.vmem [resolvable:$true] %s16
      %22 = dma.hbm_to_vmem [thread:$0]  %s15, 256, %s17, [#allocation3], 128, 128, 8
    $region5: #{tpu_custom_call.1} parent=1 // pred_fallthru
      _
    // Predicated region
    $region6: #{tpu_custom_call.1} parent=1 // pred_check
      _
    $region7: #{tpu_custom_call.1} parent=1 // pred_check_branch
      %24 = sbr.rel (0) target = $region9
    $region8: #{tpu_custom_call.1} parent=1 // pred_region
      %26 = vsyncadd [#allocation6], 0
      %s27 = sshll.u32 %s1, 4
      %s28 = int_to_ptr.hbm [resolvable:$true] %s27
      %s29 = sshll.u32 [#allocation5], 4
      %s30 = int_to_ptr.vmem [resolvable:$true] %s29
      %35 = dma.hbm_to_vmem [thread:$0]  %s28, 256, %s30, [#allocation6], 128, 128, 8
    $region9: #{tpu_custom_call.1} parent=1 // pred_fallthru
      _
    // Predicated region
    $region10: #{tpu_custom_call.1} parent=1 // pred_check
      _
    $region11: #{tpu_custom_call.1} parent=1 // pred_check_branch
      %37 = sbr.rel (0) target = $region13
    $region12: #{tpu_custom_call.1} parent=1 // pred_region
      %39 = dma.done [#allocation3], 256
    $region13: #{tpu_custom_call.1} parent=1 // pred_fallthru
      _
    // Predicated region
    $region14: #{tpu_custom_call.1} parent=1 // pred_check
      _
    $region15: #{tpu_custom_call.1} parent=1 // pred_check_branch
      %41 = sbr.rel (0) target = $region17
    $region16: #{tpu_custom_call.1} parent=1 // pred_region
      %43 = dma.done [#allocation6], 256
    $region17: #{tpu_custom_call.1} parent=1 // pred_fallthru
      _
    %v44 = vld [vmem:[#allocation2] sm:$0xff]
    %v45 = vld [vmem:[#allocation2 + $0x8] sm:$0xff]
    %v46 = vld [vmem:[#allocation5] sm:$0xff]
    %v47 = vld [vmem:[#allocation5 + $0x8] sm:$0xff]
    %v48 = vand.u32 2147483647, %v44
    %v49 = vand.u32 2147483647, %v45
    %v50 = vsub.f32 0.0, %v48
    %v51 = vsub.f32 0.0, %v49
    %v52 = vmul.f32 %v50, 1.442695
    %v53 = vpow.pop %v52
    %v54 = vmul.f32 %v51, 1.442695
    %v55 = vpow.pop %v54
    %v56 = vmax.f32 %v44, 0.0
    %v57 = vmax.f32 %v45, 0.0
    %v58 = vmul.f32 %v44, %v46
    %v59 = vmul.f32 %v45, %v47
    %v60 = vsub.f32 %v56, %v58
    %v61 = vsub.f32 %v57, %v59
    %v62 = vadd.f32 %v53, 1.0
    %v63 = vlog2.pop %v62
    %v64 = vmul.f32 %v63, 0.6931472
    %v65 = vmul.f32 -0.5, %v53
    %v66 = vadd.f32 %v65, 1.0
    %v67 = vmul.f32 %v66, %v53
    %v68 = vand.u32 2147483647, %v53
    %vm69 = vcmp.lt.f32.partialorder %v68, 0.0004427343
    %v70 = vsel %vm69, %v67, %v64
    %v71 = vadd.f32 %v55, 1.0
    %v72 = vlog2.pop %v71
    %v73 = vmul.f32 %v72, 0.6931472
    %v74 = vmul.f32 -0.5, %v55
    %v75 = vadd.f32 %v74, 1.0
    %v76 = vmul.f32 %v75, %v55
    %v77 = vand.u32 2147483647, %v55
    %vm78 = vcmp.lt.f32.partialorder %v77, 0.0004427343
    %v79 = vsel %vm78, %v76, %v73
    %v80 = vadd.f32 %v60, %v70
    %v81 = vadd.f32 %v61, %v79
    %v82 = vadd.f32 %v53, 1.0
    %v83 = vadd.f32 %v55, 1.0
    %v84 = vrcp.pop %v82
    %v85 = vmul.f32 %v82, %v84
    %v86 = vsub.f32 1.0, %v85
    %v87 = vmul.f32 %v84, %v86
    %v88 = vadd.f32 %v84, %v87
    %vm89 = vweird.f32 %v82
    %vm90 = vweird.f32 %v84
    %vm91 = vmor %vm89, %vm90
    %v92 = vsel %vm91, %v84, %v88
    %v93 = vand.u32 2147483647, %v82
    %vm94 = vcmp.eq.f32.partialorder %v93, 8.507059e+37
    %v95 = vand.u32 %v82, 2147483648
    %v96 = vor.u32 1.1754944e-38, %v95
    %v97 = vsel %vm94, %v96, %v92
    %v98 = vmul.f32 1.0, %v97
    %v99 = vrcp.pop %v83
    %v100 = vmul.f32 %v83, %v99
    %v101 = vsub.f32 1.0, %v100
    %v102 = vmul.f32 %v99, %v101
    %v103 = vadd.f32 %v99, %v102
    %vm104 = vweird.f32 %v83
    %vm105 = vweird.f32 %v99
    %vm106 = vmor %vm104, %vm105
    %v107 = vsel %vm106, %v99, %v103
    %v108 = vand.u32 2147483647, %v83
    %vm109 = vcmp.eq.f32.partialorder %v108, 8.507059e+37
    %v110 = vand.u32 %v83, 2147483648
    %v111 = vor.u32 1.1754944e-38, %v110
    %v112 = vsel %vm109, %v111, %v107
    %v113 = vmul.f32 1.0, %v112
    %vm114 = vcmp.ge.f32.partialorder %v44, 0.0
    %vm115 = vcmp.ge.f32.partialorder %v45, 0.0
    %v116 = vsel %vm114, 1.0, %v53
    %v117 = vsel %vm115, 1.0, %v55
    %v118 = vmul.f32 %v116, %v98
    %v119 = vmul.f32 %v117, %v113
    %v120 = vmul.f32 %v46, %v118
    %v121 = vmul.f32 %v47, %v119
    %v122 = vsub.f32 1.0, %v46
    %v123 = vsub.f32 1.0, %v47
    %v124 = vsub.f32 1.0, %v118
    %v125 = vsub.f32 1.0, %v119
    %v126 = vmul.f32 %v122, %v124
    %v127 = vmul.f32 %v123, %v125
    %v128 = vadd.f32 %v120, %v126
    %v129 = vadd.f32 %v121, %v127
    %v130 = vmul.f32 %v46, 0.25
    %v131 = vmul.f32 %v47, 0.25
    %v132 = vmul.f32 %v122, 0.75
    %v133 = vmul.f32 %v123, 0.75
    %v134 = vadd.f32 %v130, %v132
    %v135 = vadd.f32 %v131, %v133
    %v136 = vsub.f32 1.0, %v128
    %v137 = vsub.f32 1.0, %v129
    %v138 = vrsqrt.pop %v136
    %v139 = vmul.f32 %v138, %v136
    %v140 = vmul.f32 %v139, %v138
    %v141 = vmul.f32 0.5, %v140
    %v142 = vsub.f32 1.5, %v141
    %v143 = vmul.f32 %v138, %v142
    %v144 = vmul.f32 %v136, %v143
    %vm145 = vcmp.eq.f32.partialorder %v136, inf
    %v146 = vsel %vm145, %v136, %v144
    %vm147 = vcmp.eq.f32.partialorder %v136, 0.0
    %v148 = vand.u32 %v136, 2147483648
    %v149 = vsel %vm147, %v148, %v146
    %v150 = vrsqrt.pop %v137
    %v151 = vmul.f32 %v150, %v137
    %v152 = vmul.f32 %v151, %v150
    %v153 = vmul.f32 0.5, %v152
    %v154 = vsub.f32 1.5, %v153
    %v155 = vmul.f32 %v150, %v154
    %v156 = vmul.f32 %v137, %v155
    %vm157 = vcmp.eq.f32.partialorder %v137, inf
    %v158 = vsel %vm157, %v137, %v156
    %vm159 = vcmp.eq.f32.partialorder %v137, 0.0
    %v160 = vand.u32 %v137, 2147483648
    %v161 = vsel %vm159, %v160, %v158
    %v162 = vmul.f32 %v136, %v149
    %v163 = vmul.f32 %v137, %v161
    %v164 = vmul.f32 %v80, %v134
    %v165 = vmul.f32 %v81, %v135
    %v166 = vmul.f32 %v164, %v162
    %v167 = vmul.f32 %v165, %v163
    %v168 = vadd.f32 %v166, %v167
    %169 = vst [vmem:[#allocation7] sm:$0xff] %v168
    // Predicated region
    $region18: #{tpu_custom_call.1} parent=1 // pred_check
      _
    $region19: #{tpu_custom_call.1} parent=1 // pred_check_branch
      %171 = sbr.rel (0) target = $region21
    $region20: #{tpu_custom_call.1} parent=1 // pred_region
      %173 = vsyncadd [#allocation4], 0
      %s175 = sshll.u32 [#allocation7], 4
      %s176 = int_to_ptr.vmem [resolvable:$true] %s175
      %s177 = sshll.u32 %s2, 4
      %s178 = int_to_ptr.hbm [resolvable:$true] %s177
      %180 = dma.vmem_to_hbm [thread:$0]  %s176, 128, %s178, [#allocation4]
    $region21: #{tpu_custom_call.1} parent=1 // pred_fallthru
      _
    // Predicated region
    $region22: #{tpu_custom_call.1} parent=1 // pred_check
      _
    $region23: #{tpu_custom_call.1} parent=1 // pred_check_branch
      %182 = sbr.rel (0) target = $region25
    $region24: #{tpu_custom_call.1} parent=1 // pred_region
      %184 = dma.done [#allocation4], 128
    $region25: #{tpu_custom_call.1} parent=1 // pred_fallthru
      _
    %185 = vsyncpa [#allocation3], 1
    %186 = vsyncpa [#allocation6], 1
    %187 = vsyncpa [#allocation4], 1

</llo_original>
